<compile_context>
chip_gen: v6e
topology: v6e:2x2x1
jax: 0.10.0
libtpu: 0.0.40
codegen_flags: <defaults>
</compile_context>

<pallas_src>
import jax
import jax.numpy as jnp
from jax.experimental import pallas as pl

TOKEN_NUM = 10
NUM_HEADS = 8
T_PAD = 16                        # pad 10 tokens -> 16 per head
HT = NUM_HEADS * T_PAD            # 128 lanes: one full vreg per batch row


def _stl_kernel(x_ref, wq_ref, kbd_ref, bias_ref, seg_ref, vbd_ref, out_ref):
    # x_ref    : [N, d_q]
    # wq_ref   : [d_q, E]   (1/sqrt(key_dim) already folded in)
    # kbd_ref  : [E, HT]    block-diagonal keys (per-head K^T blocks)
    # bias_ref : [1, HT]    0 for real tokens, -1e30 for padded token slots
    # seg_ref  : [HT, HT]   block-diagonal ones (per-head segment sums)
    # vbd_ref  : [HT, E]    block-diagonal values
    # out_ref  : [N, E]
    q = jnp.dot(x_ref[...], wq_ref[...], preferred_element_type=jnp.float32)   # [N, E]
    s = jnp.dot(q, kbd_ref[...], preferred_element_type=jnp.float32)           # [N, HT]
    s = s + bias_ref[...]                                                       # mask padded slots

    # Per-head softmax over each 16-lane segment.  Subtracting the row-wise max
    # (shared by all heads of a row) is mathematically equivalent -- the shift
    # cancels inside each segment -- and avoids any per-segment reduction.
    m = jnp.max(s, axis=-1, keepdims=True)                                      # [N, 1]
    p = jnp.exp(s - m)                                                          # padded lanes -> exactly 0
    denom = jnp.dot(p, seg_ref[...], preferred_element_type=jnp.float32)        # per-head sum, broadcast to its 16 lanes
    p = p * pl.reciprocal(denom, approx=False)

    out_ref[...] = jnp.dot(p, vbd_ref[...],
                           preferred_element_type=jnp.float32).astype(out_ref.dtype)


def prepare_stl_params(embed, w_query, w_key, w_value):
    """x-independent precomputation (parameters only) — do this once at init."""
    T, d_k = embed.shape
    E = w_query.shape[1]
    hd = E // NUM_HEADS
    assert T == TOKEN_NUM and E % NUM_HEADS == 0
    assert w_key.shape == (d_k, E) and w_value.shape == (d_k, E)

    scale = 1.0 / (float(d_k) ** 0.5)            # torch: scores / key_dim ** 0.5
    wq_scaled = (w_query * scale).astype(jnp.float32)

    keys = jnp.tanh(embed)                       # [T, d_k]
    k = keys @ w_key                             # [T, E]
    v = keys @ w_value                           # [T, E]

    k_heads = k.reshape(T, NUM_HEADS, hd).transpose(1, 2, 0)   # [H, hd, T]  (K^T per head)
    v_heads = v.reshape(T, NUM_HEADS, hd).transpose(1, 0, 2)   # [H, T, hd]

    k_bd = jnp.zeros((E, HT), jnp.float32)
    v_bd = jnp.zeros((HT, E), jnp.float32)
    for h in range(NUM_HEADS):
        k_bd = k_bd.at[h * hd:(h + 1) * hd, h * T_PAD:h * T_PAD + T].set(k_heads[h])
        v_bd = v_bd.at[h * T_PAD:h * T_PAD + T, h * hd:(h + 1) * hd].set(v_heads[h])

    lane = jnp.arange(HT)
    bias = jnp.where((lane % T_PAD) < T, 0.0, -1e30).astype(jnp.float32)[None, :]  # [1, HT]
    seg = (lane[:, None] // T_PAD == lane[None, :] // T_PAD).astype(jnp.float32)   # [HT, HT]
    return wq_scaled, k_bd, bias, seg, v_bd


def stl_forward(x, wq_scaled, k_bd, bias, seg, v_bd):
    """x: [N, E//2]; returns style_embed: [N, 1, E] (same as torch STL)."""
    N = x.shape[0]
    E = wq_scaled.shape[1]
    # ~70 KB total footprint: single grid-less invocation, whole arrays in VMEM.
    out = pl.pallas_call(
        _stl_kernel,
        out_shape=jax.ShapeDtypeStruct((N, E), jnp.float32),
    )(x, wq_scaled, k_bd, bias, seg, v_bd)
    return out[:, None, :]  # [N, 1, E]


def _stl_reference(x, embed, w_query, w_key, w_value):
    """Pure-JAX reference mirroring the torch module semantics."""
    T, d_k = embed.shape
    E = w_query.shape[1]
    hd = E // NUM_HEADS
    N = x.shape[0]
    keys = jnp.tanh(embed)                                         # [T, d_k]
    q = x @ w_query                                                # [N, E]
    k = keys @ w_key                                               # [T, E]
    v = keys @ w_value                                             # [T, E]
    qh = q.reshape(N, NUM_HEADS, hd).transpose(1, 0, 2)            # [H, N, hd]
    kh = k.reshape(T, NUM_HEADS, hd).transpose(1, 0, 2)            # [H, T, hd]
    vh = v.reshape(T, NUM_HEADS, hd).transpose(1, 0, 2)            # [H, T, hd]
    scores = jnp.einsum("hnd,htd->hnt", qh, kh) / (d_k ** 0.5)     # [H, N, T]
    p = jax.nn.softmax(scores, axis=-1)
    out = jnp.einsum("hnt,htd->hnd", p, vh)                        # [H, N, hd]
    out = out.transpose(1, 0, 2).reshape(N, E)                     # [N, E]
    return out[:, None, :]                                         # [N, 1, E]


if __name__ == "__main__":
    token_embedding_size = 64                     # E; divisible by num_heads (8) and 2
    N = 2
    d_q = token_embedding_size // 2               # 32
    d_k = token_embedding_size // NUM_HEADS       # 8

    key = jax.random.PRNGKey(0)
    k_in, k_emb, k_q, k_k, k_v = jax.random.split(key, 5)

    # inputs --- [N, token_embedding_size//2]
    x = jax.random.normal(k_in, (N, d_q), dtype=jnp.float32)

    # embed parameter: init.normal_(mean=0, std=0.5), shape [token_num, E//num_heads]
    embed = 0.5 * jax.random.normal(k_emb, (TOKEN_NUM, d_k), dtype=jnp.float32)

    # Linear weights (bias=False), stored pre-transposed as [in, out] so y = x @ W.
    w_query = 0.1 * jax.random.normal(k_q, (d_q, token_embedding_size), dtype=jnp.float32)
    w_key = 0.1 * jax.random.normal(k_k, (d_k, token_embedding_size), dtype=jnp.float32)
    w_value = 0.1 * jax.random.normal(k_v, (d_k, token_embedding_size), dtype=jnp.float32)

    params = prepare_stl_params(embed, w_query, w_key, w_value)
    style_embed = stl_forward(x, *params)
    jax.block_until_ready(style_embed)

    ref = _stl_reference(x, embed, w_query, w_key, w_value)
    assert style_embed.shape == (N, 1, token_embedding_size)
    assert jnp.allclose(style_embed, ref, atol=1e-5, rtol=1e-5), "mismatch vs reference"

    print("KERNEL_OK")
</pallas_src>

<mosaic_0001>
module attributes {stable_mosaic.version = 11 : i64} {
  func.func @_stl_kernel(%arg0: memref<2x32xf32, #tpu.memory_space<vmem>>, %arg1: memref<32x64xf32, #tpu.memory_space<vmem>>, %arg2: memref<64x128xf32, #tpu.memory_space<vmem>>, %arg3: memref<1x128xf32, #tpu.memory_space<vmem>>, %arg4: memref<128x128xf32, #tpu.memory_space<vmem>>, %arg5: memref<128x64xf32, #tpu.memory_space<vmem>>, %arg6: memref<2x64xf32, #tpu.memory_space<vmem>>) attributes {dimension_semantics = [], scalar_prefetch = 0 : i64, scratch_operands = 0 : i64, tpu.core_type = #tpu.core_type<tc>} {
    %c0 = arith.constant 0 : index
    %c0_0 = arith.constant 0 : index
    %0 = vector.load %arg0[%c0, %c0_0] : memref<2x32xf32, #tpu.memory_space<vmem>>, vector<2x32xf32>
    %c0_1 = arith.constant 0 : index
    %c0_2 = arith.constant 0 : index
    %1 = vector.load %arg1[%c0_1, %c0_2] : memref<32x64xf32, #tpu.memory_space<vmem>>, vector<32x64xf32>
    %cst = arith.constant dense<0.000000e+00> : vector<2x64xf32>
    %2 = tpu.matmul %0, %1, %cst {dimension_numbers = #tpu.dot_dimension_numbers<[1], [0], [0], [1], [0, 0, 1, 1], [], []>} : vector<2x32xf32>, vector<32x64xf32>, vector<2x64xf32> -> vector<2x64xf32>
    %c0_3 = arith.constant 0 : index
    %c0_4 = arith.constant 0 : index
    %3 = vector.load %arg2[%c0_3, %c0_4] : memref<64x128xf32, #tpu.memory_space<vmem>>, vector<64x128xf32>
    %cst_5 = arith.constant dense<0.000000e+00> : vector<2x128xf32>
    %4 = tpu.matmul %2, %3, %cst_5 {dimension_numbers = #tpu.dot_dimension_numbers<[1], [0], [0], [1], [0, 0, 1, 1], [], []>} : vector<2x64xf32>, vector<64x128xf32>, vector<2x128xf32> -> vector<2x128xf32>
    %c0_6 = arith.constant 0 : index
    %c0_7 = arith.constant 0 : index
    %5 = vector.load %arg3[%c0_6, %c0_7] : memref<1x128xf32, #tpu.memory_space<vmem>>, vector<1x128xf32>
    %6 = vector.broadcast %5 : vector<1x128xf32> to vector<2x128xf32>
    %7 = arith.addf %4, %6 : vector<2x128xf32>
    %cst_8 = arith.constant dense<0xFF800000> : vector<2xf32>
    %8 = vector.multi_reduction <maximumf>, %7, %cst_8 [1] : vector<2x128xf32> to vector<2xf32>
    %9 = vector.shape_cast %8 : vector<2xf32> to vector<2x1xf32>
    %10 = vector.broadcast %9 : vector<2x1xf32> to vector<2x128xf32>
    %11 = arith.subf %7, %10 : vector<2x128xf32>
    %12 = math.exp %11 : vector<2x128xf32>
    %c0_9 = arith.constant 0 : index
    %c0_10 = arith.constant 0 : index
    %13 = vector.load %arg4[%c0_9, %c0_10] : memref<128x128xf32, #tpu.memory_space<vmem>>, vector<128x128xf32>
    %cst_11 = arith.constant dense<0.000000e+00> : vector<2x128xf32>
    %14 = tpu.matmul %12, %13, %cst_11 {dimension_numbers = #tpu.dot_dimension_numbers<[1], [0], [0], [1], [0, 0, 1, 1], [], []>} : vector<2x128xf32>, vector<128x128xf32>, vector<2x128xf32> -> vector<2x128xf32>
    %15 = tpu.reciprocal %14 : vector<2x128xf32> -> vector<2x128xf32>
    %16 = arith.mulf %12, %15 : vector<2x128xf32>
    %c0_12 = arith.constant 0 : index
    %c0_13 = arith.constant 0 : index
    %17 = vector.load %arg5[%c0_12, %c0_13] : memref<128x64xf32, #tpu.memory_space<vmem>>, vector<128x64xf32>
    %cst_14 = arith.constant dense<0.000000e+00> : vector<2x64xf32>
    %18 = tpu.matmul %16, %17, %cst_14 {dimension_numbers = #tpu.dot_dimension_numbers<[1], [0], [0], [1], [0, 0, 1, 1], [], []>} : vector<2x128xf32>, vector<128x64xf32>, vector<2x64xf32> -> vector<2x64xf32>
    %c0_15 = arith.constant 0 : index
    %c0_16 = arith.constant 0 : index
    %19 = vector.load %arg6[%c0_15, %c0_16] : memref<2x64xf32, #tpu.memory_space<vmem>>, vector<2x64xf32>
    tpu.vector_store %arg6[%c0_15, %c0_16], %18 {strides = array<i32>} : memref<2x64xf32, #tpu.memory_space<vmem>>, vector<2x64xf32>,
    return
  }
}

</mosaic_0001>

<llo_original>
// kernel: tpu_custom_call.1
$region0: #{tpu_custom_call.1}
  #allocation0 [shape = 'u32[]', space=smem, size = 0x4, offset = 0x4, fixed_abs, tag = 'smem constant byte address 0x4 - core index']
  #allocation1 [shape = 'u32[144,128]{1,0:T(1,128)}', space=vmem, size = 0x12000, scoped, tag = 'internal scratch']
  %s0 = inlined_call_operand.vmem [shape: f32[2,32], index: 0, kind: input, shape index: {}]
  %s1 = inlined_call_operand.hbm [shape: f32[32,64], index: 1, kind: input, shape index: {}]
  %s2 = inlined_call_operand.vmem [shape: f32[64,128], index: 2, kind: input, shape index: {}]
  %s3 = inlined_call_operand.vmem [shape: f32[1,128], index: 3, kind: input, shape index: {}]
  %s4 = inlined_call_operand.vmem [shape: f32[128,128], index: 4, kind: input, shape index: {}]
  %s5 = inlined_call_operand.vmem [shape: f32[128,64], index: 5, kind: input, shape index: {}]
  %s6 = inlined_call_operand.hbm [shape: f32[2,64], index: 6, kind: output, shape index: {}]
  %s7 = sld [smem:[#allocation0]]
  $region38: #{tpu_custom_call.1} parent=0
    _
  %s9 = ssub.s32 1, %s7
  %s10 = scalar_select 0, %s9, %s7
  $region1: #{tpu_custom_call.1} parent=0
    #allocation2 [shape = 'u8[16384]{0}', space=vmem, size = 0x4000, scoped, tag = 'input window, operand 1, single buffered']
    #allocation3 [shape = 's32[1]{0}', space=sflag, size = 0x4, scoped, tag = 'scoped memory for tpu_custom_call.1']
    #allocation4 [shape = 's32[1]{0}', space=sflag, size = 0x4, scoped, tag = 'scoped memory for tpu_custom_call.1']
    #allocation5 [shape = 'u8[1024]{0}', space=vmem, size = 0x400, scoped, tag = 'output window, operand 0, single buffered']
    %11 = vsyncpa [#allocation3], 0
    %12 = vsyncpa [#allocation4], 0
    // Predicated region
    $region2: #{tpu_custom_call.1} parent=1 // pred_check
      _
    $region3: #{tpu_custom_call.1} parent=1 // pred_check_branch
      %14 = sbr.rel (0) target = $region5
    $region4: #{tpu_custom_call.1} parent=1 // pred_region
      _
    $region5: #{tpu_custom_call.1} parent=1 // pred_fallthru
      _
    // Predicated region
    $region6: #{tpu_custom_call.1} parent=1 // pred_check
      _
    $region7: #{tpu_custom_call.1} parent=1 // pred_check_branch
      %16 = sbr.rel (0) target = $region9
    $region8: #{tpu_custom_call.1} parent=1 // pred_region
      %s18 = ssub.s32 512, 512
      %19 = vsyncadd [#allocation3], %s18
      %s20 = sshll.u32 [#allocation2], 4
      %s21 = int_to_ptr.vmem [resolvable:$true] %s20
      %26 = dma.hbm_to_vmem [thread:$0]  %s1, 512, %s21, [#allocation3], 128, 128, 8
    $region9: #{tpu_custom_call.1} parent=1 // pred_fallthru
      _
    // Predicated region
    $region10: #{tpu_custom_call.1} parent=1 // pred_check
      _
    $region11: #{tpu_custom_call.1} parent=1 // pred_check_branch
      %28 = sbr.rel (0) target = $region13
    $region12: #{tpu_custom_call.1} parent=1 // pred_region
      _
    $region13: #{tpu_custom_call.1} parent=1 // pred_fallthru
      _
    // Predicated region
    $region14: #{tpu_custom_call.1} parent=1 // pred_check
      _
    $region15: #{tpu_custom_call.1} parent=1 // pred_check_branch
      %30 = sbr.rel (0) target = $region17
    $region16: #{tpu_custom_call.1} parent=1 // pred_region
      _
    $region17: #{tpu_custom_call.1} parent=1 // pred_fallthru
      _
    // Predicated region
    $region18: #{tpu_custom_call.1} parent=1 // pred_check
      _
    $region19: #{tpu_custom_call.1} parent=1 // pred_check_branch
      %32 = sbr.rel (0) target = $region21
    $region20: #{tpu_custom_call.1} parent=1 // pred_region
      _
    $region21: #{tpu_custom_call.1} parent=1 // pred_fallthru
      _
    // Predicated region
    $region22: #{tpu_custom_call.1} parent=1 // pred_check
      _
    $region23: #{tpu_custom_call.1} parent=1 // pred_check_branch
      %34 = sbr.rel (0) target = $region25
    $region24: #{tpu_custom_call.1} parent=1 // pred_region
      _
    $region25: #{tpu_custom_call.1} parent=1 // pred_fallthru
      _
    // Predicated region
    $region26: #{tpu_custom_call.1} parent=1 // pred_check
      _
    $region27: #{tpu_custom_call.1} parent=1 // pred_check_branch
      %36 = sbr.rel (0) target = $region29
    $region28: #{tpu_custom_call.1} parent=1 // pred_region
      %37 = dma.done [#allocation3], 512
    $region29: #{tpu_custom_call.1} parent=1 // pred_fallthru
      _
    %v38 = vld [vmem:[%s0] sm:$0x3]
    %v39 = vld [vmem:[#allocation2] sm:$0xff]
    %v40 = vld [vmem:[#allocation2 + $0x8] sm:$0xff]
    %v41 = vld [vmem:[#allocation2 + $0x10] sm:$0xff]
    %v42 = vld [vmem:[#allocation2 + $0x18] sm:$0xff]
    %vm43 = vcmask 261120
    %v45 = vsel %vm43, %v38, 0
    %47 = vmatprep.subr.mxu0 0.0
    %48 = vmatpush1.msra.mxu0 0.0
    %49 = vmatprep.subr.mxu0 0.0
    %50 = vmatpush1.msra.mxu0 0.0
    %51 = vmatprep.subr.mxu0 0.0
    %52 = vmatpush1.msra.mxu0 0.0
    %53 = vmatprep.subr.mxu0 0.0
    %54 = vmatpush1.msra.mxu0 0.0
    %55 = vmatprep.subr.mxu0 0.0
    %56 = vmatpush1.msra.mxu0 0.0
    %57 = vmatprep.subr.mxu0 0.0
    %58 = vmatpush1.msra.mxu0 0.0
    %59 = vmatprep.subr.mxu0 0.0
    %60 = vmatpush1.msra.mxu0 0.0
    %61 = vmatprep.subr.mxu0 0.0
    %62 = vmatpush1.msra.mxu0 0.0
    %63 = vmatprep.subr.mxu0 0.0
    %64 = vmatpush1.msra.mxu0 0.0
    %65 = vmatprep.subr.mxu0 0.0
    %66 = vmatpush1.msra.mxu0 0.0
    %67 = vmatprep.subr.mxu0 0.0
    %68 = vmatpush1.msra.mxu0 0.0
    %69 = vmatprep.subr.mxu0 0.0
    %70 = vmatpush1.msra.mxu0 0.0
    %71 = vmatprep.subr.mxu0 0.0
    %72 = vmatpush1.msra.mxu0 %v42
    %73 = vmatprep.subr.mxu0 0.0
    %74 = vmatpush1.msra.mxu0 %v41
    %75 = vmatprep.subr.mxu0 0.0
    %76 = vmatpush1.msra.mxu0 %v40
    %77 = vmatprep.subr.mxu0 0.0
    %78 = vmatpush1.msra.mxu0 %v39
    %79 = vmatprep.subr.mxu0 0.0
    %80 = vmatpush2.msra.mxu0 0.0
    %81 = vmatprep.subr.mxu0 0.0
    %82 = vmatpush2.msra.mxu0 0.0
    %83 = vmatprep.subr.mxu0 0.0
    %84 = vmatpush2.msra.mxu0 0.0
    %85 = vmatprep.subr.mxu0 0.0
    %86 = vmatpush2.msra.mxu0 0.0
    %87 = vmatprep.subr.mxu0 0.0
    %88 = vmatpush2.msra.mxu0 0.0
    %89 = vmatprep.subr.mxu0 0.0
    %90 = vmatpush2.msra.mxu0 0.0
    %91 = vmatprep.subr.mxu0 0.0
    %92 = vmatpush2.msra.mxu0 0.0
    %93 = vmatprep.subr.mxu0 0.0
    %94 = vmatpush2.msra.mxu0 0.0
    %95 = vmatprep.subr.mxu0 0.0
    %96 = vmatpush2.msra.mxu0 0.0
    %97 = vmatprep.subr.mxu0 0.0
    %98 = vmatpush2.msra.mxu0 0.0
    %99 = vmatprep.subr.mxu0 0.0
    %100 = vmatpush2.msra.mxu0 0.0
    %101 = vmatprep.subr.mxu0 0.0
    %102 = vmatpush2.msra.mxu0 0.0
    %103 = vmatprep.subr.mxu0 0.0
    %104 = vmatpush2.msra.mxu0 0.0
    %105 = vmatprep.subr.mxu0 0.0
    %106 = vmatpush2.msra.mxu0 0.0
    %107 = vmatprep.subr.mxu0 0.0
    %108 = vmatpush2.msra.mxu0 0.0
    %109 = vmatprep.subr.mxu0 0.0
    %110 = vmatpush2.msra.mxu0 0.0
    %111 = vmatprep.mubr.f32.mxu0 0.0
    %112 = vmatmul.mubr.f32.gmra.mxu0 %v45
    %v113 = vpop.f32.mrf.mxu0
    %v114 = vadd.f32 0.0, %v113
    %v115 = vpop.f32.mrf.mxu0
    %116 = vdwg.mxu0
    %v117 = vld [vmem:[%s2] sm:$0xff]
    %v118 = vld [vmem:[%s2 + $0x8] sm:$0xff]
    %v119 = vld [vmem:[%s2 + $0x10] sm:$0xff]
    %v120 = vld [vmem:[%s2 + $0x18] sm:$0xff]
    %v121 = vld [vmem:[%s2 + $0x20] sm:$0xff]
    %v122 = vld [vmem:[%s2 + $0x28] sm:$0xff]
    %v123 = vld [vmem:[%s2 + $0x30] sm:$0xff]
    %v124 = vld [vmem:[%s2 + $0x38] sm:$0xff]
    %v125 = vld [vmem:[%s3] sm:$0x1]
    %v127 = vlaneseq
    %v128 = vshrl.u32 %v127, 7
    %v129 = vsub.s32 0, %v128
    %v130 = vrot.slane %v125, %v129
    %vm132 = vcmask 523264
    %v134 = vsel %vm132, %v114, 0
    %136 = vmatprep.subr.mxu0 0.0
    %137 = vmatpush1.msra.mxu0 0.0
    %138 = vmatprep.subr.mxu0 0.0
    %139 = vmatpush1.msra.mxu0 0.0
    %140 = vmatprep.subr.mxu0 0.0
    %141 = vmatpush1.msra.mxu0 0.0
    %142 = vmatprep.subr.mxu0 0.0
    %143 = vmatpush1.msra.mxu0 0.0
    %144 = vmatprep.subr.mxu0 0.0
    %145 = vmatpush1.msra.mxu0 0.0
    %146 = vmatprep.subr.mxu0 0.0
    %147 = vmatpush1.msra.mxu0 0.0
    %148 = vmatprep.subr.mxu0 0.0
    %149 = vmatpush1.msra.mxu0 0.0
    %150 = vmatprep.subr.mxu0 0.0
    %151 = vmatpush1.msra.mxu0 0.0
    %152 = vmatprep.subr.mxu0 0.0
    %153 = vmatpush1.msra.mxu0 %v124
    %154 = vmatprep.subr.mxu0 0.0
    %155 = vmatpush1.msra.mxu0 %v123
    %156 = vmatprep.subr.mxu0 0.0
    %157 = vmatpush1.msra.mxu0 %v122
    %158 = vmatprep.subr.mxu0 0.0
    %159 = vmatpush1.msra.mxu0 %v121
    %160 = vmatprep.subr.mxu0 0.0
    %161 = vmatpush1.msra.mxu0 %v120
    %162 = vmatprep.subr.mxu0 0.0
    %163 = vmatpush1.msra.mxu0 %v119
    %164 = vmatprep.subr.mxu0 0.0
    %165 = vmatpush1.msra.mxu0 %v118
    %166 = vmatprep.subr.mxu0 0.0
    %167 = vmatpush1.msra.mxu0 %v117
    %168 = vmatprep.subr.mxu0 0.0
    %169 = vmatpush2.msra.mxu0 0.0
    %170 = vmatprep.subr.mxu0 0.0
    %171 = vmatpush2.msra.mxu0 0.0
    %172 = vmatprep.subr.mxu0 0.0
    %173 = vmatpush2.msra.mxu0 0.0
    %174 = vmatprep.subr.mxu0 0.0
    %175 = vmatpush2.msra.mxu0 0.0
    %176 = vmatprep.subr.mxu0 0.0
    %177 = vmatpush2.msra.mxu0 0.0
    %178 = vmatprep.subr.mxu0 0.0
    %179 = vmatpush2.msra.mxu0 0.0
    %180 = vmatprep.subr.mxu0 0.0
    %181 = vmatpush2.msra.mxu0 0.0
    %182 = vmatprep.subr.mxu0 0.0
    %183 = vmatpush2.msra.mxu0 0.0
    %184 = vmatprep.subr.mxu0 0.0
    %185 = vmatpush2.msra.mxu0 0.0
    %186 = vmatprep.subr.mxu0 0.0
    %187 = vmatpush2.msra.mxu0 0.0
    %188 = vmatprep.subr.mxu0 0.0
    %189 = vmatpush2.msra.mxu0 0.0
    %190 = vmatprep.subr.mxu0 0.0
    %191 = vmatpush2.msra.mxu0 0.0
    %192 = vmatprep.subr.mxu0 0.0
    %193 = vmatpush2.msra.mxu0 0.0
    %194 = vmatprep.subr.mxu0 0.0
    %195 = vmatpush2.msra.mxu0 0.0
    %196 = vmatprep.subr.mxu0 0.0
    %197 = vmatpush2.msra.mxu0 0.0
    %198 = vmatprep.subr.mxu0 0.0
    %199 = vmatpush2.msra.mxu0 0.0
    %200 = vmatprep.mubr.f32.mxu0 0.0
    %201 = vmatmul.mubr.f32.gmra.mxu0 %v134
    %v202 = vpop.f32.mrf.mxu0
    %v203 = vadd.f32 %v130, %v202
    %v204 = vpop.f32.mrf.mxu0
    %205 = vdwg.mxu0
    %vm206 = vcmask 1041408
    %v207 = vsel %vm206, %v203, -inf
    %208 = vmax.xlane.f32.xlu0 %v207
    %v209 = vpop.xlane.xlu0 %208
    %v210 = vsub.f32 %v203, %v209
    %v211 = vmul.f32 %v210, 1.442695
    %v212 = vpow.pop %v211
    %v213 = vld [vmem:[%s4] sm:$0xff]
    %v214 = vld [vmem:[%s4 + $0x8] sm:$0xff]
    %v215 = vld [vmem:[%s4 + $0x10] sm:$0xff]
    %v216 = vld [vmem:[%s4 + $0x18] sm:$0xff]
    %v217 = vld [vmem:[%s4 + $0x20] sm:$0xff]
    %v218 = vld [vmem:[%s4 + $0x28] sm:$0xff]
    %v219 = vld [vmem:[%s4 + $0x30] sm:$0xff]
    %v220 = vld [vmem:[%s4 + $0x38] sm:$0xff]
    %v221 = vld [vmem:[%s4 + $0x40] sm:$0xff]
    %v222 = vld [vmem:[%s4 + $0x48] sm:$0xff]
    %v223 = vld [vmem:[%s4 + $0x50] sm:$0xff]
    %v224 = vld [vmem:[%s4 + $0x58] sm:$0xff]
    %v225 = vld [vmem:[%s4 + $0x60] sm:$0xff]
    %v226 = vld [vmem:[%s4 + $0x68] sm:$0xff]
    %v227 = vld [vmem:[%s4 + $0x70] sm:$0xff]
    %v228 = vld [vmem:[%s4 + $0x78] sm:$0xff]
    %229 = vmatprep.subr.mxu0 0.0
    %230 = vmatpush1.msra.mxu0 %v228
    %231 = vmatprep.subr.mxu0 0.0
    %232 = vmatpush1.msra.mxu0 %v227
    %233 = vmatprep.subr.mxu0 0.0
    %234 = vmatpush1.msra.mxu0 %v226
    %235 = vmatprep.subr.mxu0 0.0
    %236 = vmatpush1.msra.mxu0 %v225
    %237 = vmatprep.subr.mxu0 0.0
    %238 = vmatpush1.msra.mxu0 %v224
    %239 = vmatprep.subr.mxu0 0.0
    %240 = vmatpush1.msra.mxu0 %v223
    %241 = vmatprep.subr.mxu0 0.0
    %242 = vmatpush1.msra.mxu0 %v222
    %243 = vmatprep.subr.mxu0 0.0
    %244 = vmatpush1.msra.mxu0 %v221
    %245 = vmatprep.subr.mxu0 0.0
    %246 = vmatpush1.msra.mxu0 %v220
    %247 = vmatprep.subr.mxu0 0.0
    %248 = vmatpush1.msra.mxu0 %v219
    %249 = vmatprep.subr.mxu0 0.0
    %250 = vmatpush1.msra.mxu0 %v218
    %251 = vmatprep.subr.mxu0 0.0
    %252 = vmatpush1.msra.mxu0 %v217
    %253 = vmatprep.subr.mxu0 0.0
    %254 = vmatpush1.msra.mxu0 %v216
    %255 = vmatprep.subr.mxu0 0.0
    %256 = vmatpush1.msra.mxu0 %v215
    %257 = vmatprep.subr.mxu0 0.0
    %258 = vmatpush1.msra.mxu0 %v214
    %259 = vmatprep.subr.mxu0 0.0
    %260 = vmatpush1.msra.mxu0 %v213
    %261 = vmatprep.subr.mxu0 0.0
    %262 = vmatpush2.msra.mxu0 0.0
    %263 = vmatprep.subr.mxu0 0.0
    %264 = vmatpush2.msra.mxu0 0.0
    %265 = vmatprep.subr.mxu0 0.0
    %266 = vmatpush2.msra.mxu0 0.0
    %267 = vmatprep.subr.mxu0 0.0
    %268 = vmatpush2.msra.mxu0 0.0
    %269 = vmatprep.subr.mxu0 0.0
    %270 = vmatpush2.msra.mxu0 0.0
    %271 = vmatprep.subr.mxu0 0.0
    %272 = vmatpush2.msra.mxu0 0.0
    %273 = vmatprep.subr.mxu0 0.0
    %274 = vmatpush2.msra.mxu0 0.0
    %275 = vmatprep.subr.mxu0 0.0
    %276 = vmatpush2.msra.mxu0 0.0
    %277 = vmatprep.subr.mxu0 0.0
    %278 = vmatpush2.msra.mxu0 0.0
    %279 = vmatprep.subr.mxu0 0.0
    %280 = vmatpush2.msra.mxu0 0.0
    %281 = vmatprep.subr.mxu0 0.0
    %282 = vmatpush2.msra.mxu0 0.0
    %283 = vmatprep.subr.mxu0 0.0
    %284 = vmatpush2.msra.mxu0 0.0
    %285 = vmatprep.subr.mxu0 0.0
    %286 = vmatpush2.msra.mxu0 0.0
    %287 = vmatprep.subr.mxu0 0.0
    %288 = vmatpush2.msra.mxu0 0.0
    %289 = vmatprep.subr.mxu0 0.0
    %290 = vmatpush2.msra.mxu0 0.0
    %291 = vmatprep.subr.mxu0 0.0
    %292 = vmatpush2.msra.mxu0 0.0
    %293 = vmatprep.mubr.f32.mxu0 0.0
    %294 = vmatmul.mubr.f32.gmra.mxu0 %v212
    %v295 = vpop.f32.mrf.mxu0
    %v296 = vadd.f32 0.0, %v295
    %v297 = vpop.f32.mrf.mxu0
    %298 = vdwg.mxu0
    %v299 = vrcp.pop %v296
    %v300 = vmul.f32 %v212, %v299
    %v301 = vld [vmem:[%s5] sm:$0xff]
    %v302 = vld [vmem:[%s5 + $0x8] sm:$0xff]
    %v303 = vld [vmem:[%s5 + $0x10] sm:$0xff]
    %v304 = vld [vmem:[%s5 + $0x18] sm:$0xff]
    %v305 = vld [vmem:[%s5 + $0x20] sm:$0xff]
    %v306 = vld [vmem:[%s5 + $0x28] sm:$0xff]
    %v307 = vld [vmem:[%s5 + $0x30] sm:$0xff]
    %v308 = vld [vmem:[%s5 + $0x38] sm:$0xff]
    %v309 = vld [vmem:[%s5 + $0x40] sm:$0xff]
    %v310 = vld [vmem:[%s5 + $0x48] sm:$0xff]
    %v311 = vld [vmem:[%s5 + $0x50] sm:$0xff]
    %v312 = vld [vmem:[%s5 + $0x58] sm:$0xff]
    %v313 = vld [vmem:[%s5 + $0x60] sm:$0xff]
    %v314 = vld [vmem:[%s5 + $0x68] sm:$0xff]
    %v315 = vld [vmem:[%s5 + $0x70] sm:$0xff]
    %v316 = vld [vmem:[%s5 + $0x78] sm:$0xff]
    %317 = vmatprep.subr.mxu0 0.0
    %318 = vmatpush1.msra.mxu0 %v316
    %319 = vmatprep.subr.mxu0 0.0
    %320 = vmatpush1.msra.mxu0 %v315
    %321 = vmatprep.subr.mxu0 0.0
    %322 = vmatpush1.msra.mxu0 %v314
    %323 = vmatprep.subr.mxu0 0.0
    %324 = vmatpush1.msra.mxu0 %v313
    %325 = vmatprep.subr.mxu0 0.0
    %326 = vmatpush1.msra.mxu0 %v312
    %327 = vmatprep.subr.mxu0 0.0
    %328 = vmatpush1.msra.mxu0 %v311
    %329 = vmatprep.subr.mxu0 0.0
    %330 = vmatpush1.msra.mxu0 %v310
    %331 = vmatprep.subr.mxu0 0.0
    %332 = vmatpush1.msra.mxu0 %v309
    %333 = vmatprep.subr.mxu0 0.0
    %334 = vmatpush1.msra.mxu0 %v308
    %335 = vmatprep.subr.mxu0 0.0
    %336 = vmatpush1.msra.mxu0 %v307
    %337 = vmatprep.subr.mxu0 0.0
    %338 = vmatpush1.msra.mxu0 %v306
    %339 = vmatprep.subr.mxu0 0.0
    %340 = vmatpush1.msra.mxu0 %v305
    %341 = vmatprep.subr.mxu0 0.0
    %342 = vmatpush1.msra.mxu0 %v304
    %343 = vmatprep.subr.mxu0 0.0
    %344 = vmatpush1.msra.mxu0 %v303
    %345 = vmatprep.subr.mxu0 0.0
    %346 = vmatpush1.msra.mxu0 %v302
    %347 = vmatprep.subr.mxu0 0.0
    %348 = vmatpush1.msra.mxu0 %v301
    %349 = vmatprep.subr.mxu0 0.0
    %350 = vmatpush2.msra.mxu0 0.0
    %351 = vmatprep.subr.mxu0 0.0
    %352 = vmatpush2.msra.mxu0 0.0
    %353 = vmatprep.subr.mxu0 0.0
    %354 = vmatpush2.msra.mxu0 0.0
    %355 = vmatprep.subr.mxu0 0.0
    %356 = vmatpush2.msra.mxu0 0.0
    %357 = vmatprep.subr.mxu0 0.0
    %358 = vmatpush2.msra.mxu0 0.0
    %359 = vmatprep.subr.mxu0 0.0
    %360 = vmatpush2.msra.mxu0 0.0
    %361 = vmatprep.subr.mxu0 0.0
    %362 = vmatpush2.msra.mxu0 0.0
    %363 = vmatprep.subr.mxu0 0.0
    %364 = vmatpush2.msra.mxu0 0.0
    %365 = vmatprep.subr.mxu0 0.0
    %366 = vmatpush2.msra.mxu0 0.0
    %367 = vmatprep.subr.mxu0 0.0
    %368 = vmatpush2.msra.mxu0 0.0
    %369 = vmatprep.subr.mxu0 0.0
    %370 = vmatpush2.msra.mxu0 0.0
    %371 = vmatprep.subr.mxu0 0.0
    %372 = vmatpush2.msra.mxu0 0.0
    %373 = vmatprep.subr.mxu0 0.0
    %374 = vmatpush2.msra.mxu0 0.0
    %375 = vmatprep.subr.mxu0 0.0
    %376 = vmatpush2.msra.mxu0 0.0
    %377 = vmatprep.subr.mxu0 0.0
    %378 = vmatpush2.msra.mxu0 0.0
    %379 = vmatprep.subr.mxu0 0.0
    %380 = vmatpush2.msra.mxu0 0.0
    %381 = vmatprep.mubr.f32.mxu0 0.0
    %382 = vmatmul.mubr.f32.gmra.mxu0 %v300
    %v383 = vpop.f32.mrf.mxu0
    %v384 = vadd.f32 0.0, %v383
    %v385 = vpop.f32.mrf.mxu0
    %386 = vdwg.mxu0
    %vm387 = vcmask 517120
    %388 = vst.msk [vmem:[#allocation5] sm:$0x3] %vm387, %v384
    // Predicated region
    $region30: #{tpu_custom_call.1} parent=1 // pred_check
      _
    $region31: #{tpu_custom_call.1} parent=1 // pred_check_branch
      %390 = sbr.rel (0) target = $region33
    $region32: #{tpu_custom_call.1} parent=1 // pred_region
      %s392 = ssub.s32 32, 32
      %393 = vsyncadd [#allocation4], %s392
      %s395 = sshll.u32 [#allocation5], 4
      %s396 = int_to_ptr.vmem [resolvable:$true] %s395
      %398 = dma.vmem_to_hbm [thread:$0]  %s396, 32, %s6, [#allocation4]
    $region33: #{tpu_custom_call.1} parent=1 // pred_fallthru
      _
    // Predicated region
    $region34: #{tpu_custom_call.1} parent=1 // pred_check
      _
    $region35: #{tpu_custom_call.1} parent=1 // pred_check_branch
      %400 = sbr.rel (0) target = $region37
    $region36: #{tpu_custom_call.1} parent=1 // pred_region
      %401 = dma.done [#allocation4], 32
    $region37: #{tpu_custom_call.1} parent=1 // pred_fallthru
      _
    %402 = vsyncpa [#allocation3], 1
    %403 = vsyncpa [#allocation4], 1

</llo_original>
